<compile_context>
chip_gen: v5e
topology: v5e:2x2
jax: 0.10.0
libtpu: 0.0.40
codegen_flags: <defaults>
</compile_context>

<pallas_src>
import numpy as np
import jax
import jax.numpy as jnp
from jax.experimental import pallas as pl
from jax.experimental.pallas import tpu as pltpu


def _phase_mask_kernel(c_ref, s_ref, fr_ref, fi_ref, or_ref, oi_ref):
    # c_ref/s_ref: (1, TM) f32 mask blocks (cos(phase), sin(phase)).
    # fr_ref/fi_ref/or_ref/oi_ref: (TB, TM) field blocks (real / imag planes),
    # in the caller's dtype; math runs in f32 on the VPU.
    c = c_ref[...]
    s = s_ref[...]
    fr = fr_ref[...].astype(jnp.float32)
    fi = fi_ref[...].astype(jnp.float32)
    # (fr + i*fi) * (c + i*s)
    or_ref[...] = (fr * c - fi * s).astype(or_ref.dtype)
    oi_ref[...] = (fr * s + fi * c).astype(oi_ref.dtype)


def phase_mask_forward(field_re, field_im, phase,
                       *, max_batch_tile=64, max_lane_tile=8192,
                       force_pallas=False):
    """out = field * exp(1j * phase).

    field_re/field_im: [B, size, size] (float32 or bfloat16); phase: [size, size].
    Returns (out_re, out_im) with the same shape and dtype as the field.
    """
    assert field_im.shape == field_re.shape
    assert field_re.shape[1:] == phase.shape
    dtype = field_re.dtype
    B = field_re.shape[0]
    mask_shape = phase.shape
    M = int(np.prod(mask_shape))
    itemsize = jnp.dtype(dtype).itemsize

    # Tiny workloads: launch + grid fixed cost dominates; let XLA fuse it.
    if (not force_pallas) and B * M * itemsize < (128 << 10):
        c = jnp.cos(phase).astype(jnp.float32)
        s = jnp.sin(phase).astype(jnp.float32)
        fr = field_re.astype(jnp.float32)
        fi = field_im.astype(jnp.float32)
        return ((fr * c - fi * s).astype(dtype),
                (fr * s + fi * c).astype(dtype))

    # ---- Flatten mask dims to the lane axis and pad to a multiple of 128 ----
    Mp = pl.cdiv(M, 128) * 128
    fr = field_re.reshape(B, M)
    fi = field_im.reshape(B, M)
    cp = jnp.cos(phase.astype(jnp.float32)).reshape(1, M)
    sp = jnp.sin(phase.astype(jnp.float32)).reshape(1, M)
    if Mp != M:
        pad = Mp - M
        fr = jnp.pad(fr, ((0, 0), (0, pad)))
        fi = jnp.pad(fi, ((0, 0), (0, pad)))
        cp = jnp.pad(cp, ((0, 0), (0, pad)))
        sp = jnp.pad(sp, ((0, 0), (0, pad)))

    # ---- Tile selection ----
    # Sublane packing: f32 -> 8, bf16/f16 -> 16, int8/fp8 -> 32.
    sub = {4: 8, 2: 16, 1: 32}.get(itemsize, 8)
    max_lane_tile = max(128, (max_lane_tile // 128) * 128)

    tm = min(Mp, max_lane_tile)                       # multiple of 128
    if B <= sub:
        tb = B                                        # full extent is allowed
    else:
        tb = max(sub, min(max_batch_tile, (B // sub) * sub))

    # Keep the double-buffered footprint (4 field streams x 2 buffers) <= ~24 MiB
    # so it fits v7x's 64 MiB VMEM with headroom.
    def footprint(tb_, tm_):
        return 2 * (4 * tb_ * tm_ * itemsize) + 2 * (2 * 8 * tm_ * 4)
    while footprint(tb, tm) > (24 << 20) and tb > sub:
        tb = max(sub, (tb // 2 // sub) * sub)
    while footprint(tb, tm) > (24 << 20) and tm > 128:
        tm = max(128, (tm // 2 // 128) * 128)

    n_col = pl.cdiv(Mp, tm)    # lane tiles
    n_row = pl.cdiv(B, tb)     # batch tiles

    # v7x has 2 TensorCores: guarantee >=2 parallel blocks when the workload is
    # non-trivial, otherwise one core idles and pipelining is disabled.
    if B * Mp * itemsize > (512 << 10) and n_col * n_row < 2:
        if B >= 2 * sub:
            tb = max(sub, (tb // 2 // sub) * sub)
        elif Mp >= 256:
            tm = max(128, (tm // 2 // 128) * 128)
        n_col = pl.cdiv(Mp, tm)
        n_row = pl.cdiv(B, tb)

    # Explicit VMEM budget (v5e default scoped limit is only 16 MiB).
    vmem_limit = int(min(max(2 * footprint(tb, tm), 16 << 20), 40 << 20))

    # Batch axis innermost so the (j-only) mask blocks keep the same block
    # index across consecutive steps and are not re-fetched per batch tile.
    grid = (n_col, n_row)
    field_spec = pl.BlockSpec((tb, tm), lambda j, i: (i, j))
    mask_spec = pl.BlockSpec((1, tm), lambda j, i: (0, j))

    out_re, out_im = pl.pallas_call(
        _phase_mask_kernel,
        out_shape=(jax.ShapeDtypeStruct((B, Mp), dtype),
                   jax.ShapeDtypeStruct((B, Mp), dtype)),
        grid_spec=pltpu.PrefetchScalarGridSpec(
            num_scalar_prefetch=0,
            grid=grid,
            in_specs=[mask_spec, mask_spec, field_spec, field_spec],
            out_specs=[field_spec, field_spec],
        ),
        compiler_params=pltpu.CompilerParams(
            dimension_semantics=("parallel", "parallel"),
            vmem_limit_bytes=vmem_limit),
    )(cp, sp, fr, fi)

    out_re = out_re[:, :M].reshape(field_re.shape)
    out_im = out_im[:, :M].reshape(field_im.shape)
    return out_re, out_im


if __name__ == "__main__":
    # Module config: PhaseMask(size) applied to a small batch of complex fields.
    size = 16
    B = 2

    key = jax.random.PRNGKey(0)
    k1, k2, k3 = jax.random.split(key, 3)
    # nn.init.uniform_(phase, 0, 2*pi)
    phase = jax.random.uniform(k3, (size, size), jnp.float32,
                               minval=0.0, maxval=2.0 * np.pi)
    field_re = jax.random.normal(k1, (B, size, size), jnp.float32)
    field_im = jax.random.normal(k2, (B, size, size), jnp.float32)

    # force_pallas=True so the demo exercises the kernel even at this tiny size
    # (the wrapper would otherwise route it to the fused-XLA fast path).
    out_re, out_im = phase_mask_forward(field_re, field_im, phase,
                                        force_pallas=True)
    out_re = jax.block_until_ready(out_re)
    out_im = jax.block_until_ready(out_im)

    # Reference: field * exp(1j * phase), same math as the PyTorch forward.
    field_c = field_re + 1j * field_im
    ref = field_c * jnp.exp(1j * phase.astype(jnp.complex64))
    np.testing.assert_allclose(np.asarray(out_re), np.asarray(ref.real),
                               rtol=1e-5, atol=1e-5)
    np.testing.assert_allclose(np.asarray(out_im), np.asarray(ref.imag),
                               rtol=1e-5, atol=1e-5)

    print("KERNEL_OK")
</pallas_src>

<mosaic_0001>
module attributes {stable_mosaic.version = 11 : i64} {
  func.func @_phase_mask_kernel(%arg0: i32, %arg1: i32, %arg2: memref<1x256xf32, #tpu.memory_space<vmem>>, %arg3: memref<1x256xf32, #tpu.memory_space<vmem>>, %arg4: memref<2x256xf32, #tpu.memory_space<vmem>>, %arg5: memref<2x256xf32, #tpu.memory_space<vmem>>, %arg6: memref<2x256xf32, #tpu.memory_space<vmem>>, %arg7: memref<2x256xf32, #tpu.memory_space<vmem>>) attributes {dimension_semantics = [#tpu.dimension_semantics<parallel>, #tpu.dimension_semantics<parallel>], iteration_bounds = array<i64: 1, 1>, scalar_prefetch = 0 : i64, scratch_operands = 0 : i64, tpu.core_type = #tpu.core_type<tc>, window_params = [{transform_indices = @transform_0, window_bounds = array<i64: 1, 256>}, {transform_indices = @transform_1, window_bounds = array<i64: 1, 256>}, {transform_indices = @transform_2, window_bounds = array<i64: 2, 256>}, {transform_indices = @transform_3, window_bounds = array<i64: 2, 256>}, {transform_indices = @transform_4, window_bounds = array<i64: 2, 256>}, {transform_indices = @transform_5, window_bounds = array<i64: 2, 256>}]} {
    %c0 = arith.constant 0 : index
    %c0_0 = arith.constant 0 : index
    %0 = vector.load %arg2[%c0, %c0_0] : memref<1x256xf32, #tpu.memory_space<vmem>>, vector<1x256xf32>
    %c0_1 = arith.constant 0 : index
    %c0_2 = arith.constant 0 : index
    %1 = vector.load %arg3[%c0_1, %c0_2] : memref<1x256xf32, #tpu.memory_space<vmem>>, vector<1x256xf32>
    %c0_3 = arith.constant 0 : index
    %c0_4 = arith.constant 0 : index
    %2 = vector.load %arg4[%c0_3, %c0_4] : memref<2x256xf32, #tpu.memory_space<vmem>>, vector<2x256xf32>
    %c0_5 = arith.constant 0 : index
    %c0_6 = arith.constant 0 : index
    %3 = vector.load %arg5[%c0_5, %c0_6] : memref<2x256xf32, #tpu.memory_space<vmem>>, vector<2x256xf32>
    %4 = vector.broadcast %0 : vector<1x256xf32> to vector<2x256xf32>
    %5 = arith.mulf %2, %4 : vector<2x256xf32>
    %6 = vector.broadcast %1 : vector<1x256xf32> to vector<2x256xf32>
    %7 = arith.mulf %3, %6 : vector<2x256xf32>
    %8 = arith.subf %5, %7 : vector<2x256xf32>
    %c0_7 = arith.constant 0 : index
    %c0_8 = arith.constant 0 : index
    %9 = vector.load %arg6[%c0_7, %c0_8] : memref<2x256xf32, #tpu.memory_space<vmem>>, vector<2x256xf32>
    tpu.vector_store %arg6[%c0_7, %c0_8], %8 {strides = array<i32>} : memref<2x256xf32, #tpu.memory_space<vmem>>, vector<2x256xf32>,
    %10 = vector.broadcast %1 : vector<1x256xf32> to vector<2x256xf32>
    %11 = arith.mulf %2, %10 : vector<2x256xf32>
    %12 = vector.broadcast %0 : vector<1x256xf32> to vector<2x256xf32>
    %13 = arith.mulf %3, %12 : vector<2x256xf32>
    %14 = arith.addf %11, %13 : vector<2x256xf32>
    %c0_9 = arith.constant 0 : index
    %c0_10 = arith.constant 0 : index
    %15 = vector.load %arg7[%c0_9, %c0_10] : memref<2x256xf32, #tpu.memory_space<vmem>>, vector<2x256xf32>
    tpu.vector_store %arg7[%c0_9, %c0_10], %14 {strides = array<i32>} : memref<2x256xf32, #tpu.memory_space<vmem>>, vector<2x256xf32>,
    return
  }
  func.func @transform_0(%arg0: i32, %arg1: i32) -> (i32, i32) {
    %c0_i32 = arith.constant 0 : i32
    %c0_i32_0 = arith.constant 0 : i32
    return %c0_i32, %arg0 : i32, i32
  }
  func.func @transform_1(%arg0: i32, %arg1: i32) -> (i32, i32) {
    %c0_i32 = arith.constant 0 : i32
    %c0_i32_0 = arith.constant 0 : i32
    return %c0_i32, %arg0 : i32, i32
  }
  func.func @transform_2(%arg0: i32, %arg1: i32) -> (i32, i32) {
    %c0_i32 = arith.constant 0 : i32
    return %arg1, %arg0 : i32, i32
  }
  func.func @transform_3(%arg0: i32, %arg1: i32) -> (i32, i32) {
    %c0_i32 = arith.constant 0 : i32
    return %arg1, %arg0 : i32, i32
  }
  func.func @transform_4(%arg0: i32, %arg1: i32) -> (i32, i32) {
    %c0_i32 = arith.constant 0 : i32
    return %arg1, %arg0 : i32, i32
  }
  func.func @transform_5(%arg0: i32, %arg1: i32) -> (i32, i32) {
    %c0_i32 = arith.constant 0 : i32
    return %arg1, %arg0 : i32, i32
  }
}

</mosaic_0001>

<llo_original>
// kernel: tpu_custom_call.1
$region0: #{tpu_custom_call.1}
  #allocation0 [shape = 'u32[]', space=smem, size = 0x4, offset = 0x4, fixed_abs, tag = 'smem constant byte address 0x4 - core index']
  #allocation1 [shape = 'u32[72,128]{1,0:T(1,128)}', space=vmem, size = 0x9000, scoped, tag = 'internal scratch']
  %s0 = inlined_call_operand.hbm [shape: f32[1,256], index: 0, kind: input, shape index: {}]
  %s1 = inlined_call_operand.hbm [shape: f32[1,256], index: 1, kind: input, shape index: {}]
  %s2 = inlined_call_operand.hbm [shape: f32[2,256], index: 2, kind: input, shape index: {}]
  %s3 = inlined_call_operand.hbm [shape: f32[2,256], index: 3, kind: input, shape index: {}]
  %s4 = inlined_call_operand.hbm [shape: f32[2,256], index: 4, kind: output, shape index: {0}]
  %s5 = inlined_call_operand.hbm [shape: f32[2,256], index: 5, kind: output, shape index: {1}]
  %6 = xla_tuple %s4, %s5
  %s7 = sld [smem:[#allocation0]]
  $region50: #{tpu_custom_call.1} parent=0
    _
  %s9 = ssub.s32 1, %s7
  %s10 = scalar_select 0, %s9, %s7
  $region1: #{tpu_custom_call.1} parent=0
    #allocation2 [shape = 'u8[1024]{0}', space=vmem, size = 0x400, scoped, tag = 'input window, operand 0, single buffered']
    #allocation3 [shape = 's32[1]{0}', space=sflag, size = 0x4, scoped, tag = 'scoped memory for tpu_custom_call.1']
    #allocation4 [shape = 's32[1]{0}', space=sflag, size = 0x4, scoped, tag = 'scoped memory for tpu_custom_call.1']
    #allocation5 [shape = 'u8[1024]{0}', space=vmem, size = 0x400, scoped, tag = 'input window, operand 1, single buffered']
    #allocation6 [shape = 's32[1]{0}', space=sflag, size = 0x4, scoped, tag = 'scoped memory for tpu_custom_call.1']
    #allocation7 [shape = 'u8[2048]{0}', space=vmem, size = 0x800, scoped, tag = 'input window, operand 2, single buffered']
    #allocation8 [shape = 'u8[2048]{0}', space=vmem, size = 0x800, scoped, tag = 'input window, operand 3, single buffered']
    #allocation9 [shape = 's32[1]{0}', space=sflag, size = 0x4, scoped, tag = 'scoped memory for tpu_custom_call.1']
    #allocation10 [shape = 'u8[2048]{0}', space=vmem, size = 0x800, scoped, tag = 'output window, operand 0, single buffered']
    #allocation11 [shape = 'u8[2048]{0}', space=vmem, size = 0x800, scoped, tag = 'output window, operand 1, single buffered']
    #allocation12 [shape = 's32[1]{0}', space=sflag, size = 0x4, scoped, tag = 'scoped memory for tpu_custom_call.1']
    %11 = vsyncpa [#allocation3], 0
    %12 = vsyncpa [#allocation6], 0
    %13 = vsyncpa [#allocation9], 0
    %14 = vsyncpa [#allocation4], 0
    %15 = vsyncpa [#allocation12], 0
    // Predicated region
    $region2: #{tpu_custom_call.1} parent=1 // pred_check
      _
    $region3: #{tpu_custom_call.1} parent=1 // pred_check_branch
      %17 = sbr.rel (0) target = $region5
    $region4: #{tpu_custom_call.1} parent=1 // pred_region
      %19 = vsyncadd [#allocation3], 0
      %s21 = sshll.u32 %s0, 4
      %s22 = int_to_ptr.hbm [resolvable:$true] %s21
      %s23 = sshll.u32 [#allocation2], 4
      %s24 = int_to_ptr.vmem [resolvable:$true] %s23
      %26 = dma.hbm_to_vmem [thread:$0]  %s22, 32, %s24, [#allocation3]
    $region5: #{tpu_custom_call.1} parent=1 // pred_fallthru
      _
    // Predicated region
    $region6: #{tpu_custom_call.1} parent=1 // pred_check
      _
    $region7: #{tpu_custom_call.1} parent=1 // pred_check_branch
      %28 = sbr.rel (0) target = $region9
    $region8: #{tpu_custom_call.1} parent=1 // pred_region
      %30 = vsyncadd [#allocation6], 0
      %s32 = sshll.u32 %s1, 4
      %s33 = int_to_ptr.hbm [resolvable:$true] %s32
      %s34 = sshll.u32 [#allocation5], 4
      %s35 = int_to_ptr.vmem [resolvable:$true] %s34
      %37 = dma.hbm_to_vmem [thread:$0]  %s33, 32, %s35, [#allocation6]
    $region9: #{tpu_custom_call.1} parent=1 // pred_fallthru
      _
    // Predicated region
    $region10: #{tpu_custom_call.1} parent=1 // pred_check
      _
    $region11: #{tpu_custom_call.1} parent=1 // pred_check_branch
      %39 = sbr.rel (0) target = $region13
    $region12: #{tpu_custom_call.1} parent=1 // pred_region
      %41 = vsyncadd [#allocation6], 0
      %s43 = sshll.u32 %s2, 4
      %s44 = int_to_ptr.hbm [resolvable:$true] %s43
      %s45 = sshll.u32 [#allocation7], 4
      %s46 = int_to_ptr.vmem [resolvable:$true] %s45
      %48 = dma.hbm_to_vmem [thread:$0]  %s44, 64, %s46, [#allocation6]
    $region13: #{tpu_custom_call.1} parent=1 // pred_fallthru
      _
    // Predicated region
    $region14: #{tpu_custom_call.1} parent=1 // pred_check
      _
    $region15: #{tpu_custom_call.1} parent=1 // pred_check_branch
      %50 = sbr.rel (0) target = $region17
    $region16: #{tpu_custom_call.1} parent=1 // pred_region
      %52 = vsyncadd [#allocation9], 0
      %s54 = sshll.u32 %s3, 4
      %s55 = int_to_ptr.hbm [resolvable:$true] %s54
      %s56 = sshll.u32 [#allocation8], 4
      %s57 = int_to_ptr.vmem [resolvable:$true] %s56
      %59 = dma.hbm_to_vmem [thread:$0]  %s55, 64, %s57, [#allocation9]
    $region17: #{tpu_custom_call.1} parent=1 // pred_fallthru
      _
    // Predicated region
    $region18: #{tpu_custom_call.1} parent=1 // pred_check
      _
    $region19: #{tpu_custom_call.1} parent=1 // pred_check_branch
      %61 = sbr.rel (0) target = $region21
    $region20: #{tpu_custom_call.1} parent=1 // pred_region
      %63 = dma.done [#allocation3], 32
    $region21: #{tpu_custom_call.1} parent=1 // pred_fallthru
      _
    // Predicated region
    $region22: #{tpu_custom_call.1} parent=1 // pred_check
      _
    $region23: #{tpu_custom_call.1} parent=1 // pred_check_branch
      %65 = sbr.rel (0) target = $region25
    $region24: #{tpu_custom_call.1} parent=1 // pred_region
      %67 = dma.done [#allocation6], 32
    $region25: #{tpu_custom_call.1} parent=1 // pred_fallthru
      _
    // Predicated region
    $region26: #{tpu_custom_call.1} parent=1 // pred_check
      _
    $region27: #{tpu_custom_call.1} parent=1 // pred_check_branch
      %69 = sbr.rel (0) target = $region29
    $region28: #{tpu_custom_call.1} parent=1 // pred_region
      %71 = dma.done [#allocation6], 64
    $region29: #{tpu_custom_call.1} parent=1 // pred_fallthru
      _
    // Predicated region
    $region30: #{tpu_custom_call.1} parent=1 // pred_check
      _
    $region31: #{tpu_custom_call.1} parent=1 // pred_check_branch
      %73 = sbr.rel (0) target = $region33
    $region32: #{tpu_custom_call.1} parent=1 // pred_region
      %75 = dma.done [#allocation9], 64
    $region33: #{tpu_custom_call.1} parent=1 // pred_fallthru
      _
    %v76 = vld [vmem:[#allocation2] sm:$0x3]
    %v77 = vld [vmem:[#allocation5] sm:$0x3]
    %v78 = vld [vmem:[#allocation7] sm:$0xf]
    %v79 = vld [vmem:[#allocation8] sm:$0xf]
    %v81 = vperm.slane %v76, 0
    %v82 = vperm.slane %v76, 1
    %v83 = vrot.slane %v82, 6
    %vm84 = vcmask 1041408
    %v85 = vsel %vm84, %v81, %v83
    %v87 = vmul.f32 %v78, %v85
    %v89 = vperm.slane %v77, 0
    %v90 = vperm.slane %v77, 1
    %v91 = vrot.slane %v90, 6
    %v92 = vsel %vm84, %v89, %v91
    %v94 = vmul.f32 %v79, %v92
    %v95 = vsub.f32 %v87, %v94
    %96 = vst [vmem:[#allocation10] sm:$0xf] %v95
    %v97 = vmul.f32 %v78, %v92
    %v98 = vmul.f32 %v79, %v85
    %v99 = vadd.f32 %v97, %v98
    %100 = vst [vmem:[#allocation11] sm:$0xf] %v99
    // Predicated region
    $region34: #{tpu_custom_call.1} parent=1 // pred_check
      _
    $region35: #{tpu_custom_call.1} parent=1 // pred_check_branch
      %102 = sbr.rel (0) target = $region37
    $region36: #{tpu_custom_call.1} parent=1 // pred_region
      %104 = vsyncadd [#allocation4], 0
      %s106 = sshll.u32 [#allocation10], 4
      %s107 = int_to_ptr.vmem [resolvable:$true] %s106
      %s108 = sshll.u32 %s4, 4
      %s109 = int_to_ptr.hbm [resolvable:$true] %s108
      %111 = dma.vmem_to_hbm [thread:$0]  %s107, 64, %s109, [#allocation4]
    $region37: #{tpu_custom_call.1} parent=1 // pred_fallthru
      _
    // Predicated region
    $region38: #{tpu_custom_call.1} parent=1 // pred_check
      _
    $region39: #{tpu_custom_call.1} parent=1 // pred_check_branch
      %113 = sbr.rel (0) target = $region41
    $region40: #{tpu_custom_call.1} parent=1 // pred_region
      %115 = vsyncadd [#allocation12], 0
      %s117 = sshll.u32 [#allocation11], 4
      %s118 = int_to_ptr.vmem [resolvable:$true] %s117
      %s119 = sshll.u32 %s5, 4
      %s120 = int_to_ptr.hbm [resolvable:$true] %s119
      %122 = dma.vmem_to_hbm [thread:$0]  %s118, 64, %s120, [#allocation12]
    $region41: #{tpu_custom_call.1} parent=1 // pred_fallthru
      _
    // Predicated region
    $region42: #{tpu_custom_call.1} parent=1 // pred_check
      _
    $region43: #{tpu_custom_call.1} parent=1 // pred_check_branch
      %124 = sbr.rel (0) target = $region45
    $region44: #{tpu_custom_call.1} parent=1 // pred_region
      %126 = dma.done [#allocation4], 64
    $region45: #{tpu_custom_call.1} parent=1 // pred_fallthru
      _
    // Predicated region
    $region46: #{tpu_custom_call.1} parent=1 // pred_check
      _
    $region47: #{tpu_custom_call.1} parent=1 // pred_check_branch
      %128 = sbr.rel (0) target = $region49
    $region48: #{tpu_custom_call.1} parent=1 // pred_region
      %130 = dma.done [#allocation12], 64
    $region49: #{tpu_custom_call.1} parent=1 // pred_fallthru
      _
    %131 = vsyncpa [#allocation3], 1
    %132 = vsyncpa [#allocation6], 1
    %133 = vsyncpa [#allocation9], 1
    %134 = vsyncpa [#allocation4], 1
    %135 = vsyncpa [#allocation12], 1

</llo_original>
